<compile_context>
chip_gen: v6e
topology: v6e:2x2x1
jax: 0.10.0
libtpu: 0.0.40
codegen_flags: <defaults>
</compile_context>

<pallas_src>
import functools

import jax
import jax.numpy as jnp
from jax.experimental import pallas as pl
from jax.experimental.pallas import tpu as pltpu

NEG_SLOPE = 0.2   # LeakyReLU negative_slope
LANE = 128        # lane width (last dim alignment)
SUBLANE = 16      # bf16 sublane packing (second-to-last dim alignment)


def _round_up(n, m):
    return ((n + m - 1) // m) * m


def _leaky_relu(x):
    return jnp.where(x > 0, x, NEG_SLOPE * x)


def mlp_kernel(x_ref, w1_ref, b1_ref, w2_ref, b2_ref, w3_ref, b3_ref,
               out_ref, feat_ref):
    """Fused 3-layer MLP on one (block_b, in_pad) batch tile.

    x / W are bf16 (MXU inputs), accumulation + bias add + LeakyReLU in f32.
    """
    x = x_ref[...]                                                 # bf16

    # Layer 1 + LeakyReLU (dropout = identity in eval mode)
    h = jnp.dot(x, w1_ref[...], preferred_element_type=jnp.float32)
    h = _leaky_relu(h + b1_ref[...])                               # f32

    # Layer 2 -> this is `feat` (lane-dense, padded-to-128 store)
    f = jnp.dot(h.astype(jnp.bfloat16), w2_ref[...],
                preferred_element_type=jnp.float32)
    f = f + b2_ref[...]
    feat_ref[...] = f.astype(feat_ref.dtype)

    # LeakyReLU + Layer 3
    h2 = _leaky_relu(f)
    out = jnp.dot(h2.astype(jnp.bfloat16), w3_ref[...],
                  preferred_element_type=jnp.float32)
    out_ref[...] = (out + b3_ref[...]).astype(out_ref.dtype)


def _full_spec(shape):
    # Grid-invariant block: index_map always returns block (0, 0), so the
    # tile is only DMA'd once across the whole grid.
    return pl.BlockSpec(shape, lambda *_: (0,) * len(shape))


@functools.partial(jax.jit, static_argnames=("block_b",))
def v1mlp_forward(x, w1, b1, w2, b2, w3, b3, *, block_b=512):
    """x: (B, ...) any trailing shape (flattened like torch.flatten(1)).

    Weights stored as (in_features, out_features) == PyTorch W.T; biases (1, out).
    Returns (logits, feat) in float32.
    """
    B = x.shape[0]
    x_flat = x.reshape(B, -1)
    in_dim = x_flat.shape[1]
    hid_dim = w1.shape[1]
    out_dim = w3.shape[1]

    # ---- padded (lane-dense) dims --------------------------------------
    in_pad = _round_up(in_dim, LANE)
    hid_pad = _round_up(hid_dim, LANE)
    out_pad = _round_up(out_dim, LANE)

    # ---- batch tile: big tiles, but keep >= 2 grid steps when B allows --
    if B >= 2 * SUBLANE:
        bb = min(block_b, _round_up((B + 1) // 2, SUBLANE))
    else:
        bb = _round_up(B, SUBLANE)
    bb = max(SUBLANE, _round_up(bb, SUBLANE))
    B_pad = _round_up(B, bb)
    grid_b = B_pad // bb

    # ---- pad + cast inputs ----------------------------------------------
    x_p = jnp.pad(x_flat, ((0, B_pad - B), (0, in_pad - in_dim))).astype(jnp.bfloat16)
    w1_p = jnp.pad(w1, ((0, in_pad - in_dim), (0, hid_pad - hid_dim))).astype(jnp.bfloat16)
    w2_p = jnp.pad(w2, ((0, hid_pad - hid_dim), (0, hid_pad - hid_dim))).astype(jnp.bfloat16)
    w3_p = jnp.pad(w3, ((0, hid_pad - hid_dim), (0, out_pad - out_dim))).astype(jnp.bfloat16)
    b1_p = jnp.pad(b1, ((0, 0), (0, hid_pad - hid_dim))).astype(jnp.float32)
    b2_p = jnp.pad(b2, ((0, 0), (0, hid_pad - hid_dim))).astype(jnp.float32)
    b3_p = jnp.pad(b3, ((0, 0), (0, out_pad - out_dim))).astype(jnp.float32)

    # ---- explicit VMEM budget (double-buffered tiles + weights) ----------
    tile_bytes = (
        2 * bb * in_pad * 2                       # x tile, bf16, double-buffered
        + 2 * bb * out_pad * 4                    # logits tile, f32
        + 2 * bb * hid_pad * 4                    # feat tile, f32
        + 2 * 2 * (in_pad * hid_pad + hid_pad * hid_pad + hid_pad * out_pad)  # weights bf16 x2
        + 2 * 4 * (2 * hid_pad + out_pad)         # biases f32 x2
        + 4 * bb * hid_pad * 4                    # in-kernel f32 intermediates (slack)
    )
    vmem_limit = int(min(64 * 1024 * 1024, max(32 * 1024 * 1024, 2 * tile_bytes)))

    out_shapes = (
        jax.ShapeDtypeStruct((B_pad, out_pad), jnp.float32),   # logits (padded)
        jax.ShapeDtypeStruct((B_pad, hid_pad), jnp.float32),   # feat   (padded)
    )

    logits_p, feat_p = pl.pallas_call(
        mlp_kernel,
        out_shape=out_shapes,
        grid=(grid_b,),
        in_specs=[
            pl.BlockSpec((bb, in_pad), lambda i: (i, 0)),      # x batch tile
            _full_spec((in_pad, hid_pad)),                     # W1
            _full_spec((1, hid_pad)),                          # b1
            _full_spec((hid_pad, hid_pad)),                    # W2
            _full_spec((1, hid_pad)),                          # b2
            _full_spec((hid_pad, out_pad)),                    # W3
            _full_spec((1, out_pad)),                          # b3
        ],
        out_specs=(
            pl.BlockSpec((bb, out_pad), lambda i: (i, 0)),
            pl.BlockSpec((bb, hid_pad), lambda i: (i, 0)),
        ),
        compiler_params=pltpu.CompilerParams(
            dimension_semantics=("parallel",),
            vmem_limit_bytes=vmem_limit,
        ),
    )(x_p, w1_p, b1_p, w2_p, b2_p, w3_p, b3_p)

    # Strip batch / lane padding.
    return logits_p[:B, :out_dim], feat_p[:B, :hid_dim]


def init_params(key, in_dim, hid_dim, out_dim):
    """Deterministic parameter init (Kaiming-uniform-like, like nn.Linear default)."""
    ks = jax.random.split(key, 6)

    def linear(kw, kb, fan_in, fan_out):
        bound = 1.0 / jnp.sqrt(jnp.float32(fan_in))
        # stored as (in, out) == PyTorch W.T
        w = jax.random.uniform(kw, (fan_in, fan_out), jnp.float32, -bound, bound)
        b = jax.random.uniform(kb, (1, fan_out), jnp.float32, -bound, bound)
        return w, b

    w1, b1 = linear(ks[0], ks[1], in_dim, hid_dim)
    w2, b2 = linear(ks[2], ks[3], hid_dim, hid_dim)
    w3, b3 = linear(ks[4], ks[5], hid_dim, out_dim)
    return w1, b1, w2, b2, w3, b3


def reference_forward_bf16(x_flat, w1, b1, w2, b2, w3, b3):
    """Pure-JAX reference with the same dtype discipline as the kernel."""
    xb = x_flat.astype(jnp.bfloat16)
    h = _leaky_relu(jnp.dot(xb, w1.astype(jnp.bfloat16),
                            preferred_element_type=jnp.float32) + b1)
    feat = jnp.dot(h.astype(jnp.bfloat16), w2.astype(jnp.bfloat16),
                   preferred_element_type=jnp.float32) + b2
    out = jnp.dot(_leaky_relu(feat).astype(jnp.bfloat16), w3.astype(jnp.bfloat16),
                  preferred_element_type=jnp.float32) + b3
    return out, feat


def reference_forward_f32(x_flat, w1, b1, w2, b2, w3, b3):
    h = _leaky_relu(x_flat @ w1 + b1)
    feat = h @ w2 + b2
    out = _leaky_relu(feat) @ w3 + b3
    return out, feat


if __name__ == "__main__":
    # Small shapes consistent with the module: x is (B, C, H, W), flatten(1) -> (B, in_dim).
    B, C, H, W = 2, 4, 16, 16
    in_dim = C * H * W          # 1024
    hid_dim = 32
    out_dim = 16

    key = jax.random.PRNGKey(0)
    kx, kp = jax.random.split(key)

    x = jax.random.normal(kx, (B, C, H, W), jnp.float32)
    params = init_params(kp, in_dim, hid_dim, out_dim)

    logits, feat = v1mlp_forward(x, *params, block_b=512)
    logits, feat = jax.block_until_ready((logits, feat))

    assert logits.shape == (B, out_dim) and feat.shape == (B, hid_dim)

    x_flat = x.reshape(B, -1)
    # Tight check vs. a reference using the same bf16-input / f32-accum recipe.
    ref_logits, ref_feat = reference_forward_bf16(x_flat, *params)
    assert jnp.allclose(logits, ref_logits, atol=1e-3, rtol=1e-3)
    assert jnp.allclose(feat, ref_feat, atol=1e-3, rtol=1e-3)
    # Loose sanity check vs. the full-f32 math of the PyTorch module.
    f32_logits, f32_feat = reference_forward_f32(x_flat, *params)
    assert jnp.allclose(logits, f32_logits, atol=1e-1, rtol=1e-1)
    assert jnp.allclose(feat, f32_feat, atol=1e-1, rtol=1e-1)

    print("KERNEL_OK")
</pallas_src>

<mosaic_0001>
module attributes {stable_mosaic.version = 11 : i64} {
  func.func @mlp_kernel(%arg0: i32, %arg1: memref<16x1024xbf16, #tpu.memory_space<vmem>>, %arg2: memref<1024x128xbf16, #tpu.memory_space<vmem>>, %arg3: memref<1x128xf32, #tpu.memory_space<vmem>>, %arg4: memref<128x128xbf16, #tpu.memory_space<vmem>>, %arg5: memref<1x128xf32, #tpu.memory_space<vmem>>, %arg6: memref<128x128xbf16, #tpu.memory_space<vmem>>, %arg7: memref<1x128xf32, #tpu.memory_space<vmem>>, %arg8: memref<16x128xf32, #tpu.memory_space<vmem>>, %arg9: memref<16x128xf32, #tpu.memory_space<vmem>>) attributes {dimension_semantics = [#tpu.dimension_semantics<parallel>], iteration_bounds = array<i64: 1>, scalar_prefetch = 0 : i64, scratch_operands = 0 : i64, tpu.core_type = #tpu.core_type<tc>, window_params = [{transform_indices = @transform_0, window_bounds = array<i64: 16, 1024>}, {pipeline_mode = #tpu.pipeline_mode<synchronous>, transform_indices = @transform_1, window_bounds = array<i64: 1024, 128>}, {pipeline_mode = #tpu.pipeline_mode<synchronous>, transform_indices = @transform_2, window_bounds = array<i64: 1, 128>}, {pipeline_mode = #tpu.pipeline_mode<synchronous>, transform_indices = @transform_3, window_bounds = array<i64: 128, 128>}, {pipeline_mode = #tpu.pipeline_mode<synchronous>, transform_indices = @transform_4, window_bounds = array<i64: 1, 128>}, {pipeline_mode = #tpu.pipeline_mode<synchronous>, transform_indices = @transform_5, window_bounds = array<i64: 128, 128>}, {pipeline_mode = #tpu.pipeline_mode<synchronous>, transform_indices = @transform_6, window_bounds = array<i64: 1, 128>}, {transform_indices = @transform_7, window_bounds = array<i64: 16, 128>}, {transform_indices = @transform_8, window_bounds = array<i64: 16, 128>}]} {
    %c0 = arith.constant 0 : index
    %c0_0 = arith.constant 0 : index
    %0 = vector.load %arg1[%c0, %c0_0] : memref<16x1024xbf16, #tpu.memory_space<vmem>>, vector<16x1024xbf16>
    %c0_1 = arith.constant 0 : index
    %c0_2 = arith.constant 0 : index
    %1 = vector.load %arg2[%c0_1, %c0_2] : memref<1024x128xbf16, #tpu.memory_space<vmem>>, vector<1024x128xbf16>
    %cst = arith.constant dense<0.000000e+00> : vector<16x128xf32>
    %2 = tpu.matmul %0, %1, %cst {dimension_numbers = #tpu.dot_dimension_numbers<[1], [0], [0], [1], [0, 0, 1, 1], [], []>} : vector<16x1024xbf16>, vector<1024x128xbf16>, vector<16x128xf32> -> vector<16x128xf32>
    %c0_3 = arith.constant 0 : index
    %c0_4 = arith.constant 0 : index
    %3 = vector.load %arg3[%c0_3, %c0_4] : memref<1x128xf32, #tpu.memory_space<vmem>>, vector<1x128xf32>
    %4 = vector.broadcast %3 : vector<1x128xf32> to vector<16x128xf32>
    %5 = arith.addf %2, %4 : vector<16x128xf32>
    %cst_5 = arith.constant 0.000000e+00 : f32
    %6 = vector.broadcast %cst_5 : f32 to vector<16x128xf32>
    %7 = arith.cmpf ogt, %5, %6 : vector<16x128xf32>
    %cst_6 = arith.constant 2.000000e-01 : f32
    %8 = vector.broadcast %cst_6 : f32 to vector<16x128xf32>
    %9 = arith.mulf %8, %5 : vector<16x128xf32>
    %10 = arith.select %7, %5, %9 : vector<16x128xi1>, vector<16x128xf32>
    %11 = arith.truncf %10 : vector<16x128xf32> to vector<16x128xbf16>
    %c0_7 = arith.constant 0 : index
    %c0_8 = arith.constant 0 : index
    %12 = vector.load %arg4[%c0_7, %c0_8] : memref<128x128xbf16, #tpu.memory_space<vmem>>, vector<128x128xbf16>
    %cst_9 = arith.constant dense<0.000000e+00> : vector<16x128xf32>
    %13 = tpu.matmul %11, %12, %cst_9 {dimension_numbers = #tpu.dot_dimension_numbers<[1], [0], [0], [1], [0, 0, 1, 1], [], []>} : vector<16x128xbf16>, vector<128x128xbf16>, vector<16x128xf32> -> vector<16x128xf32>
    %c0_10 = arith.constant 0 : index
    %c0_11 = arith.constant 0 : index
    %14 = vector.load %arg5[%c0_10, %c0_11] : memref<1x128xf32, #tpu.memory_space<vmem>>, vector<1x128xf32>
    %15 = vector.broadcast %14 : vector<1x128xf32> to vector<16x128xf32>
    %16 = arith.addf %13, %15 : vector<16x128xf32>
    %c0_12 = arith.constant 0 : index
    %c0_13 = arith.constant 0 : index
    %17 = vector.load %arg9[%c0_12, %c0_13] : memref<16x128xf32, #tpu.memory_space<vmem>>, vector<16x128xf32>
    tpu.vector_store %arg9[%c0_12, %c0_13], %16 {strides = array<i32>} : memref<16x128xf32, #tpu.memory_space<vmem>>, vector<16x128xf32>,
    %cst_14 = arith.constant 0.000000e+00 : f32
    %18 = vector.broadcast %cst_14 : f32 to vector<16x128xf32>
    %19 = arith.cmpf ogt, %16, %18 : vector<16x128xf32>
    %cst_15 = arith.constant 2.000000e-01 : f32
    %20 = vector.broadcast %cst_15 : f32 to vector<16x128xf32>
    %21 = arith.mulf %20, %16 : vector<16x128xf32>
    %22 = arith.select %19, %16, %21 : vector<16x128xi1>, vector<16x128xf32>
    %23 = arith.truncf %22 : vector<16x128xf32> to vector<16x128xbf16>
    %c0_16 = arith.constant 0 : index
    %c0_17 = arith.constant 0 : index
    %24 = vector.load %arg6[%c0_16, %c0_17] : memref<128x128xbf16, #tpu.memory_space<vmem>>, vector<128x128xbf16>
    %cst_18 = arith.constant dense<0.000000e+00> : vector<16x128xf32>
    %25 = tpu.matmul %23, %24, %cst_18 {dimension_numbers = #tpu.dot_dimension_numbers<[1], [0], [0], [1], [0, 0, 1, 1], [], []>} : vector<16x128xbf16>, vector<128x128xbf16>, vector<16x128xf32> -> vector<16x128xf32>
    %c0_19 = arith.constant 0 : index
    %c0_20 = arith.constant 0 : index
    %26 = vector.load %arg7[%c0_19, %c0_20] : memref<1x128xf32, #tpu.memory_space<vmem>>, vector<1x128xf32>
    %27 = vector.broadcast %26 : vector<1x128xf32> to vector<16x128xf32>
    %28 = arith.addf %25, %27 : vector<16x128xf32>
    %c0_21 = arith.constant 0 : index
    %c0_22 = arith.constant 0 : index
    %29 = vector.load %arg8[%c0_21, %c0_22] : memref<16x128xf32, #tpu.memory_space<vmem>>, vector<16x128xf32>
    tpu.vector_store %arg8[%c0_21, %c0_22], %28 {strides = array<i32>} : memref<16x128xf32, #tpu.memory_space<vmem>>, vector<16x128xf32>,
    return
  }
  func.func @transform_0(%arg0: i32) -> (i32, i32) {
    %c0_i32 = arith.constant 0 : i32
    %c0_i32_0 = arith.constant 0 : i32
    return %arg0, %c0_i32 : i32, i32
  }
  func.func @transform_1(%arg0: i32) -> (i32, i32) {
    %c0_i32 = arith.constant 0 : i32
    %c0_i32_0 = arith.constant 0 : i32
    %c0_i32_1 = arith.constant 0 : i32
    return %c0_i32, %c0_i32_0 : i32, i32
  }
  func.func @transform_2(%arg0: i32) -> (i32, i32) {
    %c0_i32 = arith.constant 0 : i32
    %c0_i32_0 = arith.constant 0 : i32
    %c0_i32_1 = arith.constant 0 : i32
    return %c0_i32, %c0_i32_0 : i32, i32
  }
  func.func @transform_3(%arg0: i32) -> (i32, i32) {
    %c0_i32 = arith.constant 0 : i32
    %c0_i32_0 = arith.constant 0 : i32
    %c0_i32_1 = arith.constant 0 : i32
    return %c0_i32, %c0_i32_0 : i32, i32
  }
  func.func @transform_4(%arg0: i32) -> (i32, i32) {
    %c0_i32 = arith.constant 0 : i32
    %c0_i32_0 = arith.constant 0 : i32
    %c0_i32_1 = arith.constant 0 : i32
    return %c0_i32, %c0_i32_0 : i32, i32
  }
  func.func @transform_5(%arg0: i32) -> (i32, i32) {
    %c0_i32 = arith.constant 0 : i32
    %c0_i32_0 = arith.constant 0 : i32
    %c0_i32_1 = arith.constant 0 : i32
    return %c0_i32, %c0_i32_0 : i32, i32
  }
  func.func @transform_6(%arg0: i32) -> (i32, i32) {
    %c0_i32 = arith.constant 0 : i32
    %c0_i32_0 = arith.constant 0 : i32
    %c0_i32_1 = arith.constant 0 : i32
    return %c0_i32, %c0_i32_0 : i32, i32
  }
  func.func @transform_7(%arg0: i32) -> (i32, i32) {
    %c0_i32 = arith.constant 0 : i32
    %c0_i32_0 = arith.constant 0 : i32
    return %arg0, %c0_i32 : i32, i32
  }
  func.func @transform_8(%arg0: i32) -> (i32, i32) {
    %c0_i32 = arith.constant 0 : i32
    %c0_i32_0 = arith.constant 0 : i32
    return %arg0, %c0_i32 : i32, i32
  }
}

</mosaic_0001>

<llo_original>
// kernel: v1mlp_forward.1
$region0: #{v1mlp_forward.1}
  #allocation0 [shape = 'u32[]', space=smem, size = 0x4, offset = 0x4, fixed_abs, tag = 'smem constant byte address 0x4 - core index']
  #allocation1 [shape = 'u32[144,128]{1,0:T(1,128)}', space=vmem, size = 0x12000, scoped, tag = 'internal scratch']
  %s0 = inlined_call_operand.vmem [shape: bf16[16,1024], index: 0, kind: input, shape index: {}]
  %s1 = inlined_call_operand.vmem [shape: bf16[1024,128], index: 1, kind: input, shape index: {}]
  %s2 = inlined_call_operand.vmem [shape: f32[1,128], index: 2, kind: input, shape index: {}]
  %s3 = inlined_call_operand.vmem [shape: bf16[128,128], index: 3, kind: input, shape index: {}]
  %s4 = inlined_call_operand.vmem [shape: f32[1,128], index: 4, kind: input, shape index: {}]
  %s5 = inlined_call_operand.vmem [shape: bf16[128,128], index: 5, kind: input, shape index: {}]
  %s6 = inlined_call_operand.vmem [shape: f32[1,128], index: 6, kind: input, shape index: {}]
  %s7 = inlined_call_operand.vmem [shape: f32[16,128], index: 7, kind: output, shape index: {0}]
  %s8 = inlined_call_operand.vmem [shape: f32[16,128], index: 8, kind: output, shape index: {1}]
  %9 = xla_tuple %s7, %s8
  %s10 = sld [smem:[#allocation0]]
  $region46: #{v1mlp_forward.1} parent=0
    _
  %s12 = ssub.s32 1, %s10
  %s13 = scalar_select 0, %s12, %s10
  // Predicated region
  $region2: #{v1mlp_forward.1} parent=0 // pred_check
    _
  $region3: #{v1mlp_forward.1} parent=0 // pred_check_branch
    %15 = sbr.rel (0) target = $region5
  $region4: #{v1mlp_forward.1} parent=0 // pred_region
    _
  $region5: #{v1mlp_forward.1} parent=0 // pred_fallthru
    _
  // Predicated region
  $region6: #{v1mlp_forward.1} parent=0 // pred_check
    _
  $region7: #{v1mlp_forward.1} parent=0 // pred_check_branch
    %17 = sbr.rel (0) target = $region9
  $region8: #{v1mlp_forward.1} parent=0 // pred_region
    _
  $region9: #{v1mlp_forward.1} parent=0 // pred_fallthru
    _
  // Predicated region
  $region10: #{v1mlp_forward.1} parent=0 // pred_check
    _
  $region11: #{v1mlp_forward.1} parent=0 // pred_check_branch
    %19 = sbr.rel (0) target = $region13
  $region12: #{v1mlp_forward.1} parent=0 // pred_region
    _
  $region13: #{v1mlp_forward.1} parent=0 // pred_fallthru
    _
  // Predicated region
  $region14: #{v1mlp_forward.1} parent=0 // pred_check
    _
  $region15: #{v1mlp_forward.1} parent=0 // pred_check_branch
    %21 = sbr.rel (0) target = $region17
  $region16: #{v1mlp_forward.1} parent=0 // pred_region
    _
  $region17: #{v1mlp_forward.1} parent=0 // pred_fallthru
    _
  // Predicated region
  $region18: #{v1mlp_forward.1} parent=0 // pred_check
    _
  $region19: #{v1mlp_forward.1} parent=0 // pred_check_branch
    %23 = sbr.rel (0) target = $region21
  $region20: #{v1mlp_forward.1} parent=0 // pred_region
    _
  $region21: #{v1mlp_forward.1} parent=0 // pred_fallthru
    _
  // Predicated region
  $region22: #{v1mlp_forward.1} parent=0 // pred_check
    _
  $region23: #{v1mlp_forward.1} parent=0 // pred_check_branch
    %25 = sbr.rel (0) target = $region25
  $region24: #{v1mlp_forward.1} parent=0 // pred_region
    _
  $region25: #{v1mlp_forward.1} parent=0 // pred_fallthru
    _
  // Predicated region
  $region26: #{v1mlp_forward.1} parent=0 // pred_check
    _
  $region27: #{v1mlp_forward.1} parent=0 // pred_check_branch
    %27 = sbr.rel (0) target = $region29
  $region28: #{v1mlp_forward.1} parent=0 // pred_region
    _
  $region29: #{v1mlp_forward.1} parent=0 // pred_fallthru
    _
  %v29 = vld [vmem:[%s0] sm:$0xff]
  %v30 = vld [vmem:[%s0 + $0x8] sm:$0xff]
  %v31 = vld [vmem:[%s0 + $0x10] sm:$0xff]
  %v32 = vld [vmem:[%s0 + $0x18] sm:$0xff]
  %v33 = vld [vmem:[%s0 + $0x20] sm:$0xff]
  %v34 = vld [vmem:[%s0 + $0x28] sm:$0xff]
  %v35 = vld [vmem:[%s0 + $0x30] sm:$0xff]
  %v36 = vld [vmem:[%s0 + $0x38] sm:$0xff]
  %v37 = vld [vmem:[%s1] sm:$0xf]
  %v38 = vld [vmem:[%s1 + $0x4] sm:$0xf]
  %v39 = vld [vmem:[%s1 + $0x8] sm:$0xf]
  %v40 = vld [vmem:[%s1 + $0xc] sm:$0xf]
  %v41 = vld [vmem:[%s1 + $0x10] sm:$0xf]
  %v42 = vld [vmem:[%s1 + $0x14] sm:$0xf]
  %v43 = vld [vmem:[%s1 + $0x18] sm:$0xf]
  %v44 = vld [vmem:[%s1 + $0x1c] sm:$0xf]
  %v45 = vld [vmem:[%s1 + $0x20] sm:$0xf]
  %v46 = vld [vmem:[%s1 + $0x24] sm:$0xf]
  %v47 = vld [vmem:[%s1 + $0x28] sm:$0xf]
  %v48 = vld [vmem:[%s1 + $0x2c] sm:$0xf]
  %v49 = vld [vmem:[%s1 + $0x30] sm:$0xf]
  %v50 = vld [vmem:[%s1 + $0x34] sm:$0xf]
  %v51 = vld [vmem:[%s1 + $0x38] sm:$0xf]
  %v52 = vld [vmem:[%s1 + $0x3c] sm:$0xf]
  %v53 = vld [vmem:[%s1 + $0x40] sm:$0xf]
  %v54 = vld [vmem:[%s1 + $0x44] sm:$0xf]
  %v55 = vld [vmem:[%s1 + $0x48] sm:$0xf]
  %v56 = vld [vmem:[%s1 + $0x4c] sm:$0xf]
  %v57 = vld [vmem:[%s1 + $0x50] sm:$0xf]
  %v58 = vld [vmem:[%s1 + $0x54] sm:$0xf]
  %v59 = vld [vmem:[%s1 + $0x58] sm:$0xf]
  %v60 = vld [vmem:[%s1 + $0x5c] sm:$0xf]
  %v61 = vld [vmem:[%s1 + $0x60] sm:$0xf]
  %v62 = vld [vmem:[%s1 + $0x64] sm:$0xf]
  %v63 = vld [vmem:[%s1 + $0x68] sm:$0xf]
  %v64 = vld [vmem:[%s1 + $0x6c] sm:$0xf]
  %v65 = vld [vmem:[%s1 + $0x70] sm:$0xf]
  %v66 = vld [vmem:[%s1 + $0x74] sm:$0xf]
  %v67 = vld [vmem:[%s1 + $0x78] sm:$0xf]
  %v68 = vld [vmem:[%s1 + $0x7c] sm:$0xf]
  %v69 = vld [vmem:[%s1 + $0x80] sm:$0xf]
  %v70 = vld [vmem:[%s1 + $0x84] sm:$0xf]
  %v71 = vld [vmem:[%s1 + $0x88] sm:$0xf]
  %v72 = vld [vmem:[%s1 + $0x8c] sm:$0xf]
  %v73 = vld [vmem:[%s1 + $0x90] sm:$0xf]
  %v74 = vld [vmem:[%s1 + $0x94] sm:$0xf]
  %v75 = vld [vmem:[%s1 + $0x98] sm:$0xf]
  %v76 = vld [vmem:[%s1 + $0x9c] sm:$0xf]
  %v77 = vld [vmem:[%s1 + $0xa0] sm:$0xf]
  %v78 = vld [vmem:[%s1 + $0xa4] sm:$0xf]
  %v79 = vld [vmem:[%s1 + $0xa8] sm:$0xf]
  %v80 = vld [vmem:[%s1 + $0xac] sm:$0xf]
  %v81 = vld [vmem:[%s1 + $0xb0] sm:$0xf]
  %v82 = vld [vmem:[%s1 + $0xb4] sm:$0xf]
  %v83 = vld [vmem:[%s1 + $0xb8] sm:$0xf]
  %v84 = vld [vmem:[%s1 + $0xbc] sm:$0xf]
  %v85 = vld [vmem:[%s1 + $0xc0] sm:$0xf]
  %v86 = vld [vmem:[%s1 + $0xc4] sm:$0xf]
  %v87 = vld [vmem:[%s1 + $0xc8] sm:$0xf]
  %v88 = vld [vmem:[%s1 + $0xcc] sm:$0xf]
  %v89 = vld [vmem:[%s1 + $0xd0] sm:$0xf]
  %v90 = vld [vmem:[%s1 + $0xd4] sm:$0xf]
  %v91 = vld [vmem:[%s1 + $0xd8] sm:$0xf]
  %v92 = vld [vmem:[%s1 + $0xdc] sm:$0xf]
  %v93 = vld [vmem:[%s1 + $0xe0] sm:$0xf]
  %v94 = vld [vmem:[%s1 + $0xe4] sm:$0xf]
  %v95 = vld [vmem:[%s1 + $0xe8] sm:$0xf]
  %v96 = vld [vmem:[%s1 + $0xec] sm:$0xf]
  %v97 = vld [vmem:[%s1 + $0xf0] sm:$0xf]
  %v98 = vld [vmem:[%s1 + $0xf4] sm:$0xf]
  %v99 = vld [vmem:[%s1 + $0xf8] sm:$0xf]
  %v100 = vld [vmem:[%s1 + $0xfc] sm:$0xf]
  %v101 = vld [vmem:[%s1 + $0x100] sm:$0xf]
  %v102 = vld [vmem:[%s1 + $0x104] sm:$0xf]
  %v103 = vld [vmem:[%s1 + $0x108] sm:$0xf]
  %v104 = vld [vmem:[%s1 + $0x10c] sm:$0xf]
  %v105 = vld [vmem:[%s1 + $0x110] sm:$0xf]
  %v106 = vld [vmem:[%s1 + $0x114] sm:$0xf]
  %v107 = vld [vmem:[%s1 + $0x118] sm:$0xf]
  %v108 = vld [vmem:[%s1 + $0x11c] sm:$0xf]
  %v109 = vld [vmem:[%s1 + $0x120] sm:$0xf]
  %v110 = vld [vmem:[%s1 + $0x124] sm:$0xf]
  %v111 = vld [vmem:[%s1 + $0x128] sm:$0xf]
  %v112 = vld [vmem:[%s1 + $0x12c] sm:$0xf]
  %v113 = vld [vmem:[%s1 + $0x130] sm:$0xf]
  %v114 = vld [vmem:[%s1 + $0x134] sm:$0xf]
  %v115 = vld [vmem:[%s1 + $0x138] sm:$0xf]
  %v116 = vld [vmem:[%s1 + $0x13c] sm:$0xf]
  %v117 = vld [vmem:[%s1 + $0x140] sm:$0xf]
  %v118 = vld [vmem:[%s1 + $0x144] sm:$0xf]
  %v119 = vld [vmem:[%s1 + $0x148] sm:$0xf]
  %v120 = vld [vmem:[%s1 + $0x14c] sm:$0xf]
  %v121 = vld [vmem:[%s1 + $0x150] sm:$0xf]
  %v122 = vld [vmem:[%s1 + $0x154] sm:$0xf]
  %v123 = vld [vmem:[%s1 + $0x158] sm:$0xf]
  %v124 = vld [vmem:[%s1 + $0x15c] sm:$0xf]
  %v125 = vld [vmem:[%s1 + $0x160] sm:$0xf]
  %v126 = vld [vmem:[%s1 + $0x164] sm:$0xf]
  %v127 = vld [vmem:[%s1 + $0x168] sm:$0xf]
  %v128 = vld [vmem:[%s1 + $0x16c] sm:$0xf]
  %v129 = vld [vmem:[%s1 + $0x170] sm:$0xf]
  %v130 = vld [vmem:[%s1 + $0x174] sm:$0xf]
  %v131 = vld [vmem:[%s1 + $0x178] sm:$0xf]
  %v132 = vld [vmem:[%s1 + $0x17c] sm:$0xf]
  %v133 = vld [vmem:[%s1 + $0x180] sm:$0xf]
  %v134 = vld [vmem:[%s1 + $0x184] sm:$0xf]
  %v135 = vld [vmem:[%s1 + $0x188] sm:$0xf]
  %v136 = vld [vmem:[%s1 + $0x18c] sm:$0xf]
  %v137 = vld [vmem:[%s1 + $0x190] sm:$0xf]
  %v138 = vld [vmem:[%s1 + $0x194] sm:$0xf]
  %v139 = vld [vmem:[%s1 + $0x198] sm:$0xf]
  %v140 = vld [vmem:[%s1 + $0x19c] sm:$0xf]
  %v141 = vld [vmem:[%s1 + $0x1a0] sm:$0xf]
  %v142 = vld [vmem:[%s1 + $0x1a4] sm:$0xf]
  %v143 = vld [vmem:[%s1 + $0x1a8] sm:$0xf]
  %v144 = vld [vmem:[%s1 + $0x1ac] sm:$0xf]
  %v145 = vld [vmem:[%s1 + $0x1b0] sm:$0xf]
  %v146 = vld [vmem:[%s1 + $0x1b4] sm:$0xf]
  %v147 = vld [vmem:[%s1 + $0x1b8] sm:$0xf]
  %v148 = vld [vmem:[%s1 + $0x1bc] sm:$0xf]
  %v149 = vld [vmem:[%s1 + $0x1c0] sm:$0xf]
  %v150 = vld [vmem:[%s1 + $0x1c4] sm:$0xf]
  %v151 = vld [vmem:[%s1 + $0x1c8] sm:$0xf]
  %v152 = vld [vmem:[%s1 + $0x1cc] sm:$0xf]
  %v153 = vld [vmem:[%s1 + $0x1d0] sm:$0xf]
  %v154 = vld [vmem:[%s1 + $0x1d4] sm:$0xf]
  %v155 = vld [vmem:[%s1 + $0x1d8] sm:$0xf]
  %v156 = vld [vmem:[%s1 + $0x1dc] sm:$0xf]
  %v157 = vld [vmem:[%s1 + $0x1e0] sm:$0xf]
  %v158 = vld [vmem:[%s1 + $0x1e4] sm:$0xf]
  %v159 = vld [vmem:[%s1 + $0x1e8] sm:$0xf]
  %v160 = vld [vmem:[%s1 + $0x1ec] sm:$0xf]
  %v161 = vld [vmem:[%s1 + $0x1f0] sm:$0xf]
  %v162 = vld [vmem:[%s1 + $0x1f4] sm:$0xf]
  %v163 = vld [vmem:[%s1 + $0x1f8] sm:$0xf]
  %v164 = vld [vmem:[%s1 + $0x1fc] sm:$0xf]
  %v165 = vld [vmem:[%s2] sm:$0x1]
  %v167 = vlaneseq
  %v168 = vshrl.u32 %v167, 7
  %v169 = vsub.s32 0, %v168
  %v170 = vrot.slane %v165, %v169
  %v180 = vunpack.c.l.b16 %v29
  %v181 = vunpack.c.h.b16 %v29
  %v182 = vunpack.c.l.b16 %v30
  %v183 = vunpack.c.h.b16 %v30
  %v184 = vunpack.c.l.b16 %v31
  %v185 = vunpack.c.h.b16 %v31
  %v186 = vunpack.c.l.b16 %v32
  %v187 = vunpack.c.h.b16 %v32
  %v188 = vunpack.c.l.b16 %v33
  %v189 = vunpack.c.h.b16 %v33
  %v190 = vunpack.c.l.b16 %v34
  %v191 = vunpack.c.h.b16 %v34
  %v192 = vunpack.c.l.b16 %v35
  %v193 = vunpack.c.h.b16 %v35
  %v194 = vunpack.c.l.b16 %v36
  %v195 = vunpack.c.h.b16 %v36
  %v196 = vpack.c.b16 %v188, %v180
  %v197 = vpack.c.b16 %v189, %v181
  %v198 = vpack.c.b16 %v190, %v182
  %v199 = vpack.c.b16 %v191, %v183
  %v200 = vpack.c.b16 %v192, %v184
  %v201 = vpack.c.b16 %v193, %v185
  %v202 = vpack.c.b16 %v194, %v186
  %v203 = vpack.c.b16 %v195, %v187
  %v340 = vunpack.c.l.b16 %v37
  %v341 = vunpack.c.l.b16 %v38
  %v342 = vunpack.c.l.b16 %v39
  %v343 = vunpack.c.l.b16 %v40
  %v344 = vunpack.c.l.b16 %v41
  %v345 = vunpack.c.l.b16 %v42
  %v346 = vunpack.c.l.b16 %v43
  %v347 = vunpack.c.l.b16 %v44
  %v348 = vunpack.c.l.b16 %v45
  %v349 = vunpack.c.l.b16 %v46
  %v350 = vunpack.c.l.b16 %v47
  %v351 = vunpack.c.l.b16 %v48
  %v352 = vunpack.c.l.b16 %v49
  %v353 = vunpack.c.l.b16 %v50
  %v354 = vunpack.c.l.b16 %v51
  %v355 = vunpack.c.l.b16 %v52
  %v356 = vunpack.c.l.b16 %v53
  %v357 = vunpack.c.l.b16 %v54
  %v358 = vunpack.c.l.b16 %v55
  %v359 = vunpack.c.l.b16 %v56
  %v360 = vunpack.c.l.b16 %v57
  %v361 = vunpack.c.l.b16 %v58
  %v362 = vunpack.c.l.b16 %v59
  %v363 = vunpack.c.l.b16 %v60
  %v364 = vunpack.c.l.b16 %v61
  %v365 = vunpack.c.l.b16 %v62
  %v366 = vunpack.c.l.b16 %v63
  %v367 = vunpack.c.l.b16 %v64
  %v368 = vunpack.c.l.b16 %v65
  %v369 = vunpack.c.l.b16 %v66
  %v370 = vunpack.c.l.b16 %v67
  %v371 = vunpack.c.l.b16 %v68
  %v372 = vunpack.c.l.b16 %v69
  %v373 = vunpack.c.l.b16 %v70
  %v374 = vunpack.c.l.b16 %v71
  %v375 = vunpack.c.l.b16 %v72
  %v376 = vunpack.c.l.b16 %v73
  %v377 = vunpack.c.l.b16 %v74
  %v378 = vunpack.c.l.b16 %v75
  %v379 = vunpack.c.l.b16 %v76
  %v380 = vunpack.c.l.b16 %v77
  %v381 = vunpack.c.l.b16 %v78
  %v382 = vunpack.c.l.b16 %v79
  %v383 = vunpack.c.l.b16 %v80
  %v384 = vunpack.c.l.b16 %v81
  %v385 = vunpack.c.l.b16 %v82
  %v386 = vunpack.c.l.b16 %v83
  %v387 = vunpack.c.l.b16 %v84
  %v388 = vunpack.c.l.b16 %v85
  %v389 = vunpack.c.l.b16 %v86
  %v390 = vunpack.c.l.b16 %v87
  %v391 = vunpack.c.l.b16 %v88
  %v392 = vunpack.c.l.b16 %v89
  %v393 = vunpack.c.l.b16 %v90
  %v394 = vunpack.c.l.b16 %v91
  %v395 = vunpack.c.l.b16 %v92
  %v396 = vunpack.c.l.b16 %v93
  %v397 = vunpack.c.l.b16 %v94
  %v398 = vunpack.c.l.b16 %v95
  %v399 = vunpack.c.l.b16 %v96
  %v400 = vunpack.c.l.b16 %v97
  %v401 = vunpack.c.l.b16 %v98
  %v402 = vunpack.c.l.b16 %v99
  %v403 = vunpack.c.l.b16 %v100
  %v404 = vunpack.c.l.b16 %v101
  %v405 = vunpack.c.l.b16 %v102
  %v406 = vunpack.c.l.b16 %v103
  %v407 = vunpack.c.l.b16 %v104
  %v408 = vunpack.c.l.b16 %v105
  %v409 = vunpack.c.l.b16 %v106
  %v410 = vunpack.c.l.b16 %v107
  %v411 = vunpack.c.l.b16 %v108
  %v412 = vunpack.c.l.b16 %v109
  %v413 = vunpack.c.l.b16 %v110
  %v414 = vunpack.c.l.b16 %v111
  %v415 = vunpack.c.l.b16 %v112
  %v416 = vunpack.c.l.b16 %v113
  %v417 = vunpack.c.l.b16 %v114
  %v418 = vunpack.c.l.b16 %v115
  %v419 = vunpack.c.l.b16 %v116
  %v420 = vunpack.c.l.b16 %v117
  %v421 = vunpack.c.l.b16 %v118
  %v422 = vunpack.c.l.b16 %v119
  %v423 = vunpack.c.l.b16 %v120
  %v424 = vunpack.c.l.b16 %v121
  %v425 = vunpack.c.l.b16 %v122
  %v426 = vunpack.c.l.b16 %v123
  %v427 = vunpack.c.l.b16 %v124
  %v428 = vunpack.c.l.b16 %v125
  %v429 = vunpack.c.l.b16 %v126
  %v430 = vunpack.c.l.b16 %v127
  %v431 = vunpack.c.l.b16 %v128
  %v432 = vunpack.c.l.b16 %v129
  %v433 = vunpack.c.l.b16 %v130
  %v434 = vunpack.c.l.b16 %v131
  %v435 = vunpack.c.l.b16 %v132
  %v436 = vunpack.c.l.b16 %v133
  %v437 = vunpack.c.l.b16 %v134
  %v438 = vunpack.c.l.b16 %v135
  %v439 = vunpack.c.l.b16 %v136
  %v440 = vunpack.c.l.b16 %v137
  %v441 = vunpack.c.l.b16 %v138
  %v442 = vunpack.c.l.b16 %v139
  %v443 = vunpack.c.l.b16 %v140
  %v444 = vunpack.c.l.b16 %v141
  %v445 = vunpack.c.l.b16 %v142
  %v446 = vunpack.c.l.b16 %v143
  %v447 = vunpack.c.l.b16 %v144
  %v448 = vunpack.c.l.b16 %v145
  %v449 = vunpack.c.l.b16 %v146
  %v450 = vunpack.c.l.b16 %v147
  %v451 = vunpack.c.l.b16 %v148
  %v452 = vunpack.c.l.b16 %v149
  %v453 = vunpack.c.l.b16 %v150
  %v454 = vunpack.c.l.b16 %v151
  %v455 = vunpack.c.l.b16 %v152
  %v456 = vunpack.c.l.b16 %v153
  %v457 = vunpack.c.l.b16 %v154
  %v458 = vunpack.c.l.b16 %v155
  %v459 = vunpack.c.l.b16 %v156
  %v460 = vunpack.c.l.b16 %v157
  %v461 = vunpack.c.l.b16 %v158
  %v462 = vunpack.c.l.b16 %v159
  %v463 = vunpack.c.l.b16 %v160
  %v464 = vunpack.c.l.b16 %v161
  %v465 = vunpack.c.l.b16 %v162
  %v466 = vunpack.c.l.b16 %v163
  %v467 = vunpack.c.l.b16 %v164
  %v468 = vpack.c.b16 %v341, %v340
  %v469 = vpack.c.b16 %v343, %v342
  %v470 = vpack.c.b16 %v345, %v344
  %v471 = vpack.c.b16 %v347, %v346
  %v472 = vpack.c.b16 %v349, %v348
  %v473 = vpack.c.b16 %v351, %v350
  %v474 = vpack.c.b16 %v353, %v352
  %v475 = vpack.c.b16 %v355, %v354
  %v476 = vpack.c.b16 %v357, %v356
  %v477 = vpack.c.b16 %v359, %v358
  %v478 = vpack.c.b16 %v361, %v360
  %v479 = vpack.c.b16 %v363, %v362
  %v480 = vpack.c.b16 %v365, %v364
  %v481 = vpack.c.b16 %v367, %v366
  %v482 = vpack.c.b16 %v369, %v368
  %v483 = vpack.c.b16 %v371, %v370
  %v484 = vpack.c.b16 %v373, %v372
  %v485 = vpack.c.b16 %v375, %v374
  %v486 = vpack.c.b16 %v377, %v376
  %v487 = vpack.c.b16 %v379, %v378
  %v488 = vpack.c.b16 %v381, %v380
  %v489 = vpack.c.b16 %v383, %v382
  %v490 = vpack.c.b16 %v385, %v384
  %v491 = vpack.c.b16 %v387, %v386
  %v492 = vpack.c.b16 %v389, %v388
  %v493 = vpack.c.b16 %v391, %v390
  %v494 = vpack.c.b16 %v393, %v392
  %v495 = vpack.c.b16 %v395, %v394
  %v496 = vpack.c.b16 %v397, %v396
  %v497 = vpack.c.b16 %v399, %v398
  %v498 = vpack.c.b16 %v401, %v400
  %v499 = vpack.c.b16 %v403, %v402
  %v500 = vpack.c.b16 %v405, %v404
  %v501 = vpack.c.b16 %v407, %v406
  %v502 = vpack.c.b16 %v409, %v408
  %v503 = vpack.c.b16 %v411, %v410
  %v504 = vpack.c.b16 %v413, %v412
  %v505 = vpack.c.b16 %v415, %v414
  %v506 = vpack.c.b16 %v417, %v416
  %v507 = vpack.c.b16 %v419, %v418
  %v508 = vpack.c.b16 %v421, %v420
  %v509 = vpack.c.b16 %v423, %v422
  %v510 = vpack.c.b16 %v425, %v424
  %v511 = vpack.c.b16 %v427, %v426
  %v512 = vpack.c.b16 %v429, %v428
  %v513 = vpack.c.b16 %v431, %v430
  %v514 = vpack.c.b16 %v433, %v432
  %v515 = vpack.c.b16 %v435, %v434
  %v516 = vpack.c.b16 %v437, %v436
  %v517 = vpack.c.b16 %v439, %v438
  %v518 = vpack.c.b16 %v441, %v440
  %v519 = vpack.c.b16 %v443, %v442
  %v520 = vpack.c.b16 %v445, %v444
  %v521 = vpack.c.b16 %v447, %v446
  %v522 = vpack.c.b16 %v449, %v448
  %v523 = vpack.c.b16 %v451, %v450
  %v524 = vpack.c.b16 %v453, %v452
  %v525 = vpack.c.b16 %v455, %v454
  %v526 = vpack.c.b16 %v457, %v456
  %v527 = vpack.c.b16 %v459, %v458
  %v528 = vpack.c.b16 %v461, %v460
  %v529 = vpack.c.b16 %v463, %v462
  %v530 = vpack.c.b16 %v465, %v464
  %v531 = vpack.c.b16 %v467, %v466
  %596 = vmatprep.subr.bf16.mxu0 0
  %597 = vmatpush1.bf16.msra.mxu0 %v475
  %598 = vmatprep.subr.bf16.mxu0 0
  %599 = vmatpush1.bf16.msra.mxu0 %v474
  %600 = vmatprep.subr.bf16.mxu0 0
  %601 = vmatpush1.bf16.msra.mxu0 %v473
  %602 = vmatprep.subr.bf16.mxu0 0
  %603 = vmatpush1.bf16.msra.mxu0 %v472
  %604 = vmatprep.subr.bf16.mxu0 0
  %605 = vmatpush1.bf16.msra.mxu0 %v471
  %606 = vmatprep.subr.bf16.mxu0 0
  %607 = vmatpush1.bf16.msra.mxu0 %v470
  %608 = vmatprep.subr.bf16.mxu0 0
  %609 = vmatpush1.bf16.msra.mxu0 %v469
  %610 = vmatprep.subr.bf16.mxu0 0
  %611 = vmatpush1.bf16.msra.mxu0 %v468
  %612 = vmatprep.subr.bf16.mxu0 0
  %613 = vmatpush2.bf16.msra.mxu0 %v483
  %614 = vmatprep.subr.bf16.mxu0 0
  %615 = vmatpush2.bf16.msra.mxu0 %v482
  %616 = vmatprep.subr.bf16.mxu0 0
  %617 = vmatpush2.bf16.msra.mxu0 %v481
  %618 = vmatprep.subr.bf16.mxu0 0
  %619 = vmatpush2.bf16.msra.mxu0 %v480
  %620 = vmatprep.subr.bf16.mxu0 0
  %621 = vmatpush2.bf16.msra.mxu0 %v479
  %622 = vmatprep.subr.bf16.mxu0 0
  %623 = vmatpush2.bf16.msra.mxu0 %v478
  %624 = vmatprep.subr.bf16.mxu0 0
  %625 = vmatpush2.bf16.msra.mxu0 %v477
  %626 = vmatprep.subr.bf16.mxu0 0
  %627 = vmatpush2.bf16.msra.mxu0 %v476
  %628 = vmatprep.mubr.bf16.mxu0 %v197
  %629 = vmatmul.mubr.bf16.gmra.mxu0 %v196
  %v630 = vpop.f32.mrf.mxu0
  %v631 = vadd.f32 %v170, %v630
  %v632 = vpop.f32.mrf.mxu0
  %v633 = vpop.f32.mrf.mxu0
  %v634 = vadd.f32 %v170, %v633
  %v635 = vpop.f32.mrf.mxu0
  %636 = vdwg.mxu0
  %637 = vmatprep.subr.bf16.mxu0 0
  %638 = vmatpush1.bf16.msra.mxu0 %v491
  %639 = vmatprep.subr.bf16.mxu0 0
  %640 = vmatpush1.bf16.msra.mxu0 %v490
  %641 = vmatprep.subr.bf16.mxu0 0
  %642 = vmatpush1.bf16.msra.mxu0 %v489
  %643 = vmatprep.subr.bf16.mxu0 0
  %644 = vmatpush1.bf16.msra.mxu0 %v488
  %645 = vmatprep.subr.bf16.mxu0 0
  %646 = vmatpush1.bf16.msra.mxu0 %v487
  %647 = vmatprep.subr.bf16.mxu0 0
  %648 = vmatpush1.bf16.msra.mxu0 %v486
  %649 = vmatprep.subr.bf16.mxu0 0
  %650 = vmatpush1.bf16.msra.mxu0 %v485
  %651 = vmatprep.subr.bf16.mxu0 0
  %652 = vmatpush1.bf16.msra.mxu0 %v484
  %653 = vmatprep.subr.bf16.mxu0 0
  %654 = vmatpush2.bf16.msra.mxu0 %v499
  %655 = vmatprep.subr.bf16.mxu0 0
  %656 = vmatpush2.bf16.msra.mxu0 %v498
  %657 = vmatprep.subr.bf16.mxu0 0
  %658 = vmatpush2.bf16.msra.mxu0 %v497
  %659 = vmatprep.subr.bf16.mxu0 0
  %660 = vmatpush2.bf16.msra.mxu0 %v496
  %661 = vmatprep.subr.bf16.mxu0 0
  %662 = vmatpush2.bf16.msra.mxu0 %v495
  %663 = vmatprep.subr.bf16.mxu0 0
  %664 = vmatpush2.bf16.msra.mxu0 %v494
  %665 = vmatprep.subr.bf16.mxu0 0
  %666 = vmatpush2.bf16.msra.mxu0 %v493
  %667 = vmatprep.subr.bf16.mxu0 0
  %668 = vmatpush2.bf16.msra.mxu0 %v492
  %669 = vmatprep.mubr.bf16.mxu0 %v199
  %670 = vmatmul.mubr.bf16.gmra.mxu0 %v198
  %v671 = vpop.f32.mrf.mxu0
  %v672 = vadd.f32 %v631, %v671
  %v673 = vpop.f32.mrf.mxu0
  %v674 = vpop.f32.mrf.mxu0
  %v675 = vadd.f32 %v634, %v674
  %v676 = vpop.f32.mrf.mxu0
  %677 = vdwg.mxu0
  %678 = vmatprep.subr.bf16.mxu0 0
  %679 = vmatpush1.bf16.msra.mxu0 %v507
  %680 = vmatprep.subr.bf16.mxu0 0
  %681 = vmatpush1.bf16.msra.mxu0 %v506
  %682 = vmatprep.subr.bf16.mxu0 0
  %683 = vmatpush1.bf16.msra.mxu0 %v505
  %684 = vmatprep.subr.bf16.mxu0 0
  %685 = vmatpush1.bf16.msra.mxu0 %v504
  %686 = vmatprep.subr.bf16.mxu0 0
  %687 = vmatpush1.bf16.msra.mxu0 %v503
  %688 = vmatprep.subr.bf16.mxu0 0
  %689 = vmatpush1.bf16.msra.mxu0 %v502
  %690 = vmatprep.subr.bf16.mxu0 0
  %691 = vmatpush1.bf16.msra.mxu0 %v501
  %692 = vmatprep.subr.bf16.mxu0 0
  %693 = vmatpush1.bf16.msra.mxu0 %v500
  %694 = vmatprep.subr.bf16.mxu0 0
  %695 = vmatpush2.bf16.msra.mxu0 %v515
  %696 = vmatprep.subr.bf16.mxu0 0
  %697 = vmatpush2.bf16.msra.mxu0 %v514
  %698 = vmatprep.subr.bf16.mxu0 0
  %699 = vmatpush2.bf16.msra.mxu0 %v513
  %700 = vmatprep.subr.bf16.mxu0 0
  %701 = vmatpush2.bf16.msra.mxu0 %v512
  %702 = vmatprep.subr.bf16.mxu0 0
  %703 = vmatpush2.bf16.msra.mxu0 %v511
  %704 = vmatprep.subr.bf16.mxu0 0
  %705 = vmatpush2.bf16.msra.mxu0 %v510
  %706 = vmatprep.subr.bf16.mxu0 0
  %707 = vmatpush2.bf16.msra.mxu0 %v509
  %708 = vmatprep.subr.bf16.mxu0 0
  %709 = vmatpush2.bf16.msra.mxu0 %v508
  %710 = vmatprep.mubr.bf16.mxu0 %v201
  %711 = vmatmul.mubr.bf16.gmra.mxu0 %v200
  %v712 = vpop.f32.mrf.mxu0
  %v713 = vadd.f32 %v672, %v712
  %v714 = vpop.f32.mrf.mxu0
  %v715 = vpop.f32.mrf.mxu0
  %v716 = vadd.f32 %v675, %v715
  %v717 = vpop.f32.mrf.mxu0
  %718 = vdwg.mxu0
  %719 = vmatprep.subr.bf16.mxu0 0
  %720 = vmatpush1.bf16.msra.mxu0 %v523
  %721 = vmatprep.subr.bf16.mxu0 0
  %722 = vmatpush1.bf16.msra.mxu0 %v522
  %723 = vmatprep.subr.bf16.mxu0 0
  %724 = vmatpush1.bf16.msra.mxu0 %v521
  %725 = vmatprep.subr.bf16.mxu0 0
  %726 = vmatpush1.bf16.msra.mxu0 %v520
  %727 = vmatprep.subr.bf16.mxu0 0
  %728 = vmatpush1.bf16.msra.mxu0 %v519
  %729 = vmatprep.subr.bf16.mxu0 0
  %730 = vmatpush1.bf16.msra.mxu0 %v518
  %731 = vmatprep.subr.bf16.mxu0 0
  %732 = vmatpush1.bf16.msra.mxu0 %v517
  %733 = vmatprep.subr.bf16.mxu0 0
  %734 = vmatpush1.bf16.msra.mxu0 %v516
  %735 = vmatprep.subr.bf16.mxu0 0
  %736 = vmatpush2.bf16.msra.mxu0 %v531
  %737 = vmatprep.subr.bf16.mxu0 0
  %738 = vmatpush2.bf16.msra.mxu0 %v530
  %739 = vmatprep.subr.bf16.mxu0 0
  %740 = vmatpush2.bf16.msra.mxu0 %v529
  %741 = vmatprep.subr.bf16.mxu0 0
  %742 = vmatpush2.bf16.msra.mxu0 %v528
  %743 = vmatprep.subr.bf16.mxu0 0
  %744 = vmatpush2.bf16.msra.mxu0 %v527
  %745 = vmatprep.subr.bf16.mxu0 0
  %746 = vmatpush2.bf16.msra.mxu0 %v526
  %747 = vmatprep.subr.bf16.mxu0 0
  %748 = vmatpush2.bf16.msra.mxu0 %v525
  %749 = vmatprep.subr.bf16.mxu0 0
  %750 = vmatpush2.bf16.msra.mxu0 %v524
  %751 = vmatprep.mubr.bf16.mxu0 %v203
  %752 = vmatmul.mubr.bf16.gmra.mxu0 %v202
  %v753 = vpop.f32.mrf.mxu0
  %v754 = vadd.f32 %v713, %v753
  %v755 = vpop.f32.mrf.mxu0
  %v756 = vpop.f32.mrf.mxu0
  %v757 = vadd.f32 %v716, %v756
  %v758 = vpop.f32.mrf.mxu0
  %759 = vdwg.mxu0
  %vm760 = vcmp.gt.f32.partialorder %v754, 0.0
  %vm761 = vcmp.gt.f32.partialorder %v757, 0.0
  %v762 = vmul.f32 %v754, 0.2
  %v763 = vmul.f32 %v757, 0.2
  %v764 = vsel %vm760, %v754, %v762
  %v765 = vsel %vm761, %v757, %v763
  %v766 = vpack.c.bf16 %v765, %v764
  %v767 = vld [vmem:[%s3] sm:$0xf]
  %v768 = vld [vmem:[%s3 + $0x4] sm:$0xf]
  %v769 = vld [vmem:[%s3 + $0x8] sm:$0xf]
  %v770 = vld [vmem:[%s3 + $0xc] sm:$0xf]
  %v771 = vld [vmem:[%s3 + $0x10] sm:$0xf]
  %v772 = vld [vmem:[%s3 + $0x14] sm:$0xf]
  %v773 = vld [vmem:[%s3 + $0x18] sm:$0xf]
  %v774 = vld [vmem:[%s3 + $0x1c] sm:$0xf]
  %v775 = vld [vmem:[%s3 + $0x20] sm:$0xf]
  %v776 = vld [vmem:[%s3 + $0x24] sm:$0xf]
  %v777 = vld [vmem:[%s3 + $0x28] sm:$0xf]
  %v778 = vld [vmem:[%s3 + $0x2c] sm:$0xf]
  %v779 = vld [vmem:[%s3 + $0x30] sm:$0xf]
  %v780 = vld [vmem:[%s3 + $0x34] sm:$0xf]
  %v781 = vld [vmem:[%s3 + $0x38] sm:$0xf]
  %v782 = vld [vmem:[%s3 + $0x3c] sm:$0xf]
  %v783 = vld [vmem:[%s4] sm:$0x1]
  %v785 = vlaneseq
  %v786 = vshrl.u32 %v785, 7
  %v787 = vsub.s32 0, %v786
  %v788 = vrot.slane %v783, %v787
  %v806 = vunpack.c.l.b16 %v767
  %v807 = vunpack.c.l.b16 %v768
  %v808 = vunpack.c.l.b16 %v769
  %v809 = vunpack.c.l.b16 %v770
  %v810 = vunpack.c.l.b16 %v771
  %v811 = vunpack.c.l.b16 %v772
  %v812 = vunpack.c.l.b16 %v773
  %v813 = vunpack.c.l.b16 %v774
  %v814 = vunpack.c.l.b16 %v775
  %v815 = vunpack.c.l.b16 %v776
  %v816 = vunpack.c.l.b16 %v777
  %v817 = vunpack.c.l.b16 %v778
  %v818 = vunpack.c.l.b16 %v779
  %v819 = vunpack.c.l.b16 %v780
  %v820 = vunpack.c.l.b16 %v781
  %v821 = vunpack.c.l.b16 %v782
  %v822 = vpack.c.b16 %v807, %v806
  %v823 = vpack.c.b16 %v809, %v808
  %v824 = vpack.c.b16 %v811, %v810
  %v825 = vpack.c.b16 %v813, %v812
  %v826 = vpack.c.b16 %v815, %v814
  %v827 = vpack.c.b16 %v817, %v816
  %v828 = vpack.c.b16 %v819, %v818
  %v829 = vpack.c.b16 %v821, %v820
  %838 = vmatprep.subr.bf16.mxu0 0
  %839 = vmatpush1.bf16.msra.mxu0 %v829
  %840 = vmatprep.subr.bf16.mxu0 0
  %841 = vmatpush1.bf16.msra.mxu0 %v828
  %842 = vmatprep.subr.bf16.mxu0 0
  %843 = vmatpush1.bf16.msra.mxu0 %v827
  %844 = vmatprep.subr.bf16.mxu0 0
  %845 = vmatpush1.bf16.msra.mxu0 %v826
  %846 = vmatprep.subr.bf16.mxu0 0
  %847 = vmatpush1.bf16.msra.mxu0 %v825
  %848 = vmatprep.subr.bf16.mxu0 0
  %849 = vmatpush1.bf16.msra.mxu0 %v824
  %850 = vmatprep.subr.bf16.mxu0 0
  %851 = vmatpush1.bf16.msra.mxu0 %v823
  %852 = vmatprep.subr.bf16.mxu0 0
  %853 = vmatpush1.bf16.msra.mxu0 %v822
  %854 = vmatprep.subr.bf16.mxu0 0
  %855 = vmatpush2.bf16.msra.mxu0 0
  %856 = vmatprep.subr.bf16.mxu0 0
  %857 = vmatpush2.bf16.msra.mxu0 0
  %858 = vmatprep.subr.bf16.mxu0 0
  %859 = vmatpush2.bf16.msra.mxu0 0
  %860 = vmatprep.subr.bf16.mxu0 0
  %861 = vmatpush2.bf16.msra.mxu0 0
  %862 = vmatprep.subr.bf16.mxu0 0
  %863 = vmatpush2.bf16.msra.mxu0 0
  %864 = vmatprep.subr.bf16.mxu0 0
  %865 = vmatpush2.bf16.msra.mxu0 0
  %866 = vmatprep.subr.bf16.mxu0 0
  %867 = vmatpush2.bf16.msra.mxu0 0
  %868 = vmatprep.subr.bf16.mxu0 0
  %869 = vmatpush2.bf16.msra.mxu0 0
  %870 = vmatprep.mubr.bf16.mxu0 0
  %871 = vmatmul.mubr.bf16.gmra.mxu0 %v766
  %v872 = vpop.f32.mrf.mxu0
  %v873 = vadd.f32 %v788, %v872
  %v874 = vpop.f32.mrf.mxu0
  %v875 = vpop.f32.mrf.mxu0
  %v876 = vadd.f32 %v788, %v875
  %v877 = vpop.f32.mrf.mxu0
  %878 = vdwg.mxu0
  %879 = vst [vmem:[%s8] sm:$0xff] %v873
  %880 = vst [vmem:[%s8 + $0x8] sm:$0xff] %v876
  %vm881 = vcmp.gt.f32.partialorder %v873, 0.0
  %vm882 = vcmp.gt.f32.partialorder %v876, 0.0
  %v883 = vmul.f32 %v873, 0.2
  %v884 = vmul.f32 %v876, 0.2
  %v885 = vsel %vm881, %v873, %v883
  %v886 = vsel %vm882, %v876, %v884
  %v887 = vpack.c.bf16 %v886, %v885
  %v888 = vld [vmem:[%s5] sm:$0xf]
  %v889 = vld [vmem:[%s5 + $0x4] sm:$0xf]
  %v890 = vld [vmem:[%s5 + $0x8] sm:$0xf]
  %v891 = vld [vmem:[%s5 + $0xc] sm:$0xf]
  %v892 = vld [vmem:[%s5 + $0x10] sm:$0xf]
  %v893 = vld [vmem:[%s5 + $0x14] sm:$0xf]
  %v894 = vld [vmem:[%s5 + $0x18] sm:$0xf]
  %v895 = vld [vmem:[%s5 + $0x1c] sm:$0xf]
  %v896 = vld [vmem:[%s5 + $0x20] sm:$0xf]
  %v897 = vld [vmem:[%s5 + $0x24] sm:$0xf]
  %v898 = vld [vmem:[%s5 + $0x28] sm:$0xf]
  %v899 = vld [vmem:[%s5 + $0x2c] sm:$0xf]
  %v900 = vld [vmem:[%s5 + $0x30] sm:$0xf]
  %v901 = vld [vmem:[%s5 + $0x34] sm:$0xf]
  %v902 = vld [vmem:[%s5 + $0x38] sm:$0xf]
  %v903 = vld [vmem:[%s5 + $0x3c] sm:$0xf]
  %v904 = vld [vmem:[%s6] sm:$0x1]
  %v906 = vlaneseq
  %v907 = vshrl.u32 %v906, 7
  %v908 = vsub.s32 0, %v907
  %v909 = vrot.slane %v904, %v908
  %v927 = vunpack.c.l.b16 %v888
  %v928 = vunpack.c.l.b16 %v889
  %v929 = vunpack.c.l.b16 %v890
  %v930 = vunpack.c.l.b16 %v891
  %v931 = vunpack.c.l.b16 %v892
  %v932 = vunpack.c.l.b16 %v893
  %v933 = vunpack.c.l.b16 %v894
  %v934 = vunpack.c.l.b16 %v895
  %v935 = vunpack.c.l.b16 %v896
  %v936 = vunpack.c.l.b16 %v897
  %v937 = vunpack.c.l.b16 %v898
  %v938 = vunpack.c.l.b16 %v899
  %v939 = vunpack.c.l.b16 %v900
  %v940 = vunpack.c.l.b16 %v901
  %v941 = vunpack.c.l.b16 %v902
  %v942 = vunpack.c.l.b16 %v903
  %v943 = vpack.c.b16 %v928, %v927
  %v944 = vpack.c.b16 %v930, %v929
  %v945 = vpack.c.b16 %v932, %v931
  %v946 = vpack.c.b16 %v934, %v933
  %v947 = vpack.c.b16 %v936, %v935
  %v948 = vpack.c.b16 %v938, %v937
  %v949 = vpack.c.b16 %v940, %v939
  %v950 = vpack.c.b16 %v942, %v941
  %959 = vmatprep.subr.bf16.mxu0 0
  %960 = vmatpush1.bf16.msra.mxu0 %v950
  %961 = vmatprep.subr.bf16.mxu0 0
  %962 = vmatpush1.bf16.msra.mxu0 %v949
  %963 = vmatprep.subr.bf16.mxu0 0
  %964 = vmatpush1.bf16.msra.mxu0 %v948
  %965 = vmatprep.subr.bf16.mxu0 0
  %966 = vmatpush1.bf16.msra.mxu0 %v947
  %967 = vmatprep.subr.bf16.mxu0 0
  %968 = vmatpush1.bf16.msra.mxu0 %v946
  %969 = vmatprep.subr.bf16.mxu0 0
  %970 = vmatpush1.bf16.msra.mxu0 %v945
  %971 = vmatprep.subr.bf16.mxu0 0
  %972 = vmatpush1.bf16.msra.mxu0 %v944
  %973 = vmatprep.subr.bf16.mxu0 0
  %974 = vmatpush1.bf16.msra.mxu0 %v943
  %975 = vmatprep.subr.bf16.mxu0 0
  %976 = vmatpush2.bf16.msra.mxu0 0
  %977 = vmatprep.subr.bf16.mxu0 0
  %978 = vmatpush2.bf16.msra.mxu0 0
  %979 = vmatprep.subr.bf16.mxu0 0
  %980 = vmatpush2.bf16.msra.mxu0 0
  %981 = vmatprep.subr.bf16.mxu0 0
  %982 = vmatpush2.bf16.msra.mxu0 0
  %983 = vmatprep.subr.bf16.mxu0 0
  %984 = vmatpush2.bf16.msra.mxu0 0
  %985 = vmatprep.subr.bf16.mxu0 0
  %986 = vmatpush2.bf16.msra.mxu0 0
  %987 = vmatprep.subr.bf16.mxu0 0
  %988 = vmatpush2.bf16.msra.mxu0 0
  %989 = vmatprep.subr.bf16.mxu0 0
  %990 = vmatpush2.bf16.msra.mxu0 0
  %991 = vmatprep.mubr.bf16.mxu0 0
  %992 = vmatmul.mubr.bf16.gmra.mxu0 %v887
  %v993 = vpop.f32.mrf.mxu0
  %v994 = vadd.f32 %v909, %v993
  %v995 = vpop.f32.mrf.mxu0
  %v996 = vpop.f32.mrf.mxu0
  %v997 = vadd.f32 %v909, %v996
  %v998 = vpop.f32.mrf.mxu0
  %999 = vdwg.mxu0
  %1000 = vst [vmem:[%s7] sm:$0xff] %v994
  %1001 = vst [vmem:[%s7 + $0x8] sm:$0xff] %v997
  // Predicated region
  $region30: #{v1mlp_forward.1} parent=0 // pred_check
    _
  $region31: #{v1mlp_forward.1} parent=0 // pred_check_branch
    %1003 = sbr.rel (0) target = $region33
  $region32: #{v1mlp_forward.1} parent=0 // pred_region
    _
  $region33: #{v1mlp_forward.1} parent=0 // pred_fallthru
    _
  // Predicated region
  $region34: #{v1mlp_forward.1} parent=0 // pred_check
    _
  $region35: #{v1mlp_forward.1} parent=0 // pred_check_branch
    %1005 = sbr.rel (0) target = $region37
  $region36: #{v1mlp_forward.1} parent=0 // pred_region
    _
  $region37: #{v1mlp_forward.1} parent=0 // pred_fallthru
    _
  // Predicated region
  $region38: #{v1mlp_forward.1} parent=0 // pred_check
    _
  $region39: #{v1mlp_forward.1} parent=0 // pred_check_branch
    %1007 = sbr.rel (0) target = $region41
  $region40: #{v1mlp_forward.1} parent=0 // pred_region
    _
  $region41: #{v1mlp_forward.1} parent=0 // pred_fallthru
    _
  // Predicated region
  $region42: #{v1mlp_forward.1} parent=0 // pred_check
    _
  $region43: #{v1mlp_forward.1} parent=0 // pred_check_branch
    %1009 = sbr.rel (0) target = $region45
  $region44: #{v1mlp_forward.1} parent=0 // pred_region
    _
  $region45: #{v1mlp_forward.1} parent=0 // pred_fallthru
    _

</llo_original>
